<compile_context>
chip_gen: v5e
topology: v5e:2x2
jax: 0.10.0
libtpu: 0.0.40
codegen_flags: <defaults>
</compile_context>

<pallas_src>
import jax
import jax.numpy as jnp
from jax.experimental import pallas as pl
from jax.experimental.pallas import tpu as pltpu

LN_EPS = 1e-5

_TINY_BYTES = 128 << 10      # below this: plain jnp LayerNorm (XLA fuses), no pallas_call
_MIN_TILE_BYTES = 128 << 10  # don't shrink tiles below this (small tiles waste HBM BW)
_MAX_TILE_BYTES = 3 << 20    # safe under v5e 16 MiB scoped VMEM with in+out double-buffering
_MIN_STEPS = 8               # target grid length: pipelining + v7x megacore sharding


# ---------------------------------------------------------------------------
# Kernels
# ---------------------------------------------------------------------------

def _ln_affine_kernel(x_ref, affine_ref, o_ref):
    # x_ref:      (tr, C) tile of flattened instructions
    # affine_ref: (2, C)  row 0 = gamma, row 1 = beta
    # o_ref:      (tr, C) output tile
    x = x_ref[...].astype(jnp.float32)
    mean = jnp.mean(x, axis=-1, keepdims=True)
    centered = x - mean
    var = jnp.mean(centered * centered, axis=-1, keepdims=True)  # biased, like nn.LayerNorm
    y = centered * jax.lax.rsqrt(var + LN_EPS)
    gamma = affine_ref[0:1, :].astype(jnp.float32)
    beta = affine_ref[1:2, :].astype(jnp.float32)
    o_ref[...] = (y * gamma + beta).astype(o_ref.dtype)


def _ln_plain_kernel(x_ref, o_ref):
    # No-affine variant (elementwise_affine=False): no (2, C) input / DMA stream at all.
    x = x_ref[...].astype(jnp.float32)
    mean = jnp.mean(x, axis=-1, keepdims=True)
    centered = x - mean
    var = jnp.mean(centered * centered, axis=-1, keepdims=True)
    o_ref[...] = (centered * jax.lax.rsqrt(var + LN_EPS)).astype(o_ref.dtype)


# ---------------------------------------------------------------------------
# Tile / grid policy
# ---------------------------------------------------------------------------

def _round_up(x: int, m: int) -> int:
    return ((x + m - 1) // m) * m


def _cdiv(a: int, b: int) -> int:
    return -(-a // b)


def _row_tile_and_grid(rows: int, channels: int, itemsize: int):
    """Pick a row-tile size (multiple of the dtype's sublane pack) and grid length.

    Targets >= _MIN_STEPS grid steps so software pipelining overlaps DMA/compute and
    v7x megacore can shard the 'parallel' axis, while keeping each tile within
    [_MIN_TILE_BYTES, _MAX_TILE_BYTES]. Ragged last blocks are allowed (Pallas masks
    the edge), so no exact-divisor search is needed.
    """
    sub = max(8, 32 // itemsize)          # 8 rows for f32, 16 for bf16, 32 for int8/fp8
    row_bytes = channels * itemsize

    tr_min = max(sub, _round_up(_cdiv(_MIN_TILE_BYTES, row_bytes), sub))
    tr_steps = max(sub, _round_up(_cdiv(rows, _MIN_STEPS), sub))
    tr_budget = max(sub, (_MAX_TILE_BYTES // row_bytes) // sub * sub)

    tr = min(max(tr_min, tr_steps), tr_budget)
    if tr >= rows:
        return rows, 1                    # single full-extent block (tiny row counts)
    return tr, _cdiv(rows, tr)


# ---------------------------------------------------------------------------
# Forward wrapper
# ---------------------------------------------------------------------------

def _layernorm_jnp(x, affine):
    xf = x.astype(jnp.float32)
    mean = jnp.mean(xf, axis=-1, keepdims=True)
    var = jnp.mean((xf - mean) ** 2, axis=-1, keepdims=True)
    y = (xf - mean) * jax.lax.rsqrt(var + LN_EPS)
    if affine is not None:
        y = y * affine[0] + affine[1]
    return y.astype(x.dtype)


def learned_normed_instruction(instructions, gamma=None, beta=None, *, affine=None,
                               use_norm: bool = True, force_pallas: bool = False):
    """instructions: (P, T, C) stacked parameter pool. Returns (P, T, C).

    If use_norm, applies LayerNorm over C. Affine can be supplied either as
    gamma/beta (C,) vectors or as a pre-stacked (2, C) `affine` array (preferred:
    it is parameter-derived and constant across forwards, so build it once).
    If all of gamma/beta/affine are None, the no-affine kernel is used
    (elementwise_affine=False semantics).
    """
    if not use_norm:
        # forward() is a pure stack in this case — nothing to compute.
        return instructions

    P, T, C = instructions.shape
    rows = P * T
    itemsize = instructions.dtype.itemsize
    total_bytes = rows * C * itemsize

    has_affine = (affine is not None) or (gamma is not None) or (beta is not None)
    if has_affine and affine is None:
        g = gamma if gamma is not None else jnp.ones((C,), jnp.float32)
        b = beta if beta is not None else jnp.zeros((C,), jnp.float32)
        affine = jnp.stack([g, b], axis=0).astype(jnp.float32)  # (2, C)

    # Tiny parameter pools: pallas_call launch + grid machinery costs more than the
    # few tens of KB of HBM traffic — let XLA fuse a plain LayerNorm.
    if not force_pallas and total_bytes < _TINY_BYTES:
        return _layernorm_jnp(instructions, affine if has_affine else None)

    x2d = instructions.reshape(rows, C)  # lane-dense: C on the 128-lane axis
    tr, grid_len = _row_tile_and_grid(rows, C, itemsize)

    # Channel block is always the full C: required for the row-wise reduction and
    # legal for any C (full-extent dim); multiples of 128 keep stores unmasked.
    row_spec = pl.BlockSpec((tr, C), lambda i: (i, 0))
    out_shape = jax.ShapeDtypeStruct((rows, C), instructions.dtype)
    compiler_params = pltpu.CompilerParams(
        dimension_semantics=("parallel",),  # shards row tiles across TCs on v7x
    )

    if has_affine:
        out2d = pl.pallas_call(
            _ln_affine_kernel,
            out_shape=out_shape,
            grid_spec=pltpu.PrefetchScalarGridSpec(
                num_scalar_prefetch=0,
                grid=(grid_len,),
                in_specs=[
                    row_spec,
                    pl.BlockSpec((2, C), lambda i: (0, 0)),  # constant-index: stays resident
                ],
                out_specs=row_spec,
            ),
            compiler_params=compiler_params,
        )(x2d, affine)
    else:
        out2d = pl.pallas_call(
            _ln_plain_kernel,
            out_shape=out_shape,
            grid_spec=pltpu.PrefetchScalarGridSpec(
                num_scalar_prefetch=0,
                grid=(grid_len,),
                in_specs=[row_spec],
                out_specs=row_spec,
            ),
            compiler_params=compiler_params,
        )(x2d)

    return out2d.reshape(P, T, C)


# ---------------------------------------------------------------------------
# Host-side parameter construction + reference (for testing)
# ---------------------------------------------------------------------------

def _xavier_uniform(key, shape, gain=1.0, dtype=jnp.float32):
    # torch.nn.init.xavier_uniform_ on a 2-D (fan_out, fan_in) tensor; gain('linear') = 1.0
    fan_out, fan_in = shape
    limit = gain * (6.0 / (fan_in + fan_out)) ** 0.5
    return jax.random.uniform(key, shape, dtype=dtype, minval=-limit, maxval=limit)


def _make_instruction_pool(key, P, T, C, dtype=jnp.float32):
    keys = jax.random.split(key, P)
    return jnp.stack([_xavier_uniform(k, (T, C), dtype=dtype) for k in keys], axis=0)


def _reference(instructions, gamma, beta):
    x = instructions.astype(jnp.float32)
    mean = jnp.mean(x, axis=-1, keepdims=True)
    var = jnp.mean((x - mean) ** 2, axis=-1, keepdims=True)
    y = (x - mean) / jnp.sqrt(var + LN_EPS)
    return (y * gamma + beta).astype(instructions.dtype)


if __name__ == "__main__":
    key = jax.random.PRNGKey(0)
    k1, k2, k3, kg, kb = jax.random.split(key, 5)

    # --- Case 1: module-default-ish tiny pool -> fast jnp path (no pallas launch) ---
    P1, T1, C1 = 4, 10, 128
    inst1 = _make_instruction_pool(k1, P1, T1, C1)
    gamma1 = jnp.ones((C1,), jnp.float32)
    beta1 = jnp.zeros((C1,), jnp.float32)
    affine1 = jnp.stack([gamma1, beta1], axis=0)  # hoisted once; parameter-derived constant
    out1 = jax.block_until_ready(learned_normed_instruction(inst1, affine=affine1, use_norm=True))
    assert out1.shape == (P1, T1, C1)
    assert jnp.allclose(out1, _reference(inst1, gamma1, beta1), atol=2e-5, rtol=1e-5)

    # --- Case 2: Pallas path, evenly tiled grid (8 steps of 64 rows), nontrivial affine ---
    P2, T2, C2 = 8, 64, 512
    inst2 = _make_instruction_pool(k2, P2, T2, C2)
    gamma2 = jax.random.uniform(kg, (C2,), jnp.float32, minval=0.5, maxval=1.5)
    beta2 = jax.random.uniform(kb, (C2,), jnp.float32, minval=-0.5, maxval=0.5)
    affine2 = jnp.stack([gamma2, beta2], axis=0)
    out2 = jax.block_until_ready(learned_normed_instruction(inst2, affine=affine2, use_norm=True))
    assert out2.shape == (P2, T2, C2)
    assert jnp.allclose(out2, _reference(inst2, gamma2, beta2), atol=2e-5, rtol=1e-5)

    # --- Case 3: Pallas path, ragged last block (500 rows / 128-row tiles), no affine ---
    P3, T3, C3 = 5, 100, 256
    inst3 = _make_instruction_pool(k3, P3, T3, C3)
    out3 = jax.block_until_ready(learned_normed_instruction(inst3, use_norm=True))
    ref3 = _reference(inst3, jnp.ones((C3,), jnp.float32), jnp.zeros((C3,), jnp.float32))
    assert out3.shape == (P3, T3, C3)
    assert jnp.allclose(out3, ref3, atol=2e-5, rtol=1e-5)

    # --- Case 4: use_norm=False -> pure stack passthrough ---
    out4 = learned_normed_instruction(inst1, use_norm=False)
    assert jnp.array_equal(out4, inst1)

    print("KERNEL_OK")
</pallas_src>

<mosaic_0001>
module attributes {stable_mosaic.version = 11 : i64} {
  func.func @_ln_affine_kernel(%arg0: i32, %arg1: memref<64x512xf32, #tpu.memory_space<vmem>>, %arg2: memref<2x512xf32, #tpu.memory_space<vmem>>, %arg3: memref<64x512xf32, #tpu.memory_space<vmem>>) attributes {dimension_semantics = [#tpu.dimension_semantics<parallel>], iteration_bounds = array<i64: 8>, scalar_prefetch = 0 : i64, scratch_operands = 0 : i64, tpu.core_type = #tpu.core_type<tc>, window_params = [{transform_indices = @transform_0, window_bounds = array<i64: 64, 512>}, {pipeline_mode = #tpu.pipeline_mode<synchronous>, transform_indices = @transform_1, window_bounds = array<i64: 2, 512>}, {transform_indices = @transform_2, window_bounds = array<i64: 64, 512>}]} {
    %c0 = arith.constant 0 : index
    %c0_0 = arith.constant 0 : index
    %0 = vector.load %arg1[%c0, %c0_0] : memref<64x512xf32, #tpu.memory_space<vmem>>, vector<64x512xf32>
    %cst = arith.constant dense<0.000000e+00> : vector<64xf32>
    %1 = vector.multi_reduction <add>, %0, %cst [1] : vector<64x512xf32> to vector<64xf32>
    %2 = vector.shape_cast %1 : vector<64xf32> to vector<64x1xf32>
    %cst_1 = arith.constant 5.120000e+02 : f32
    %3 = vector.broadcast %cst_1 : f32 to vector<64x1xf32>
    %4 = arith.divf %2, %3 : vector<64x1xf32>
    %5 = vector.broadcast %4 : vector<64x1xf32> to vector<64x512xf32>
    %6 = arith.subf %0, %5 : vector<64x512xf32>
    %7 = arith.mulf %6, %6 : vector<64x512xf32>
    %cst_2 = arith.constant dense<0.000000e+00> : vector<64xf32>
    %8 = vector.multi_reduction <add>, %7, %cst_2 [1] : vector<64x512xf32> to vector<64xf32>
    %9 = vector.shape_cast %8 : vector<64xf32> to vector<64x1xf32>
    %cst_3 = arith.constant 5.120000e+02 : f32
    %10 = vector.broadcast %cst_3 : f32 to vector<64x1xf32>
    %11 = arith.divf %9, %10 : vector<64x1xf32>
    %cst_4 = arith.constant 9.99999974E-6 : f32
    %12 = vector.broadcast %cst_4 : f32 to vector<64x1xf32>
    %13 = arith.addf %11, %12 : vector<64x1xf32>
    %14 = math.rsqrt %13 : vector<64x1xf32>
    %15 = vector.broadcast %14 : vector<64x1xf32> to vector<64x512xf32>
    %16 = arith.mulf %6, %15 : vector<64x512xf32>
    %c0_5 = arith.constant 0 : index
    %c0_6 = arith.constant 0 : index
    %17 = vector.load %arg2[%c0_5, %c0_6] : memref<2x512xf32, #tpu.memory_space<vmem>>, vector<1x512xf32>
    %c1 = arith.constant 1 : index
    %c0_7 = arith.constant 0 : index
    %18 = vector.load %arg2[%c1, %c0_7] : memref<2x512xf32, #tpu.memory_space<vmem>>, vector<1x512xf32>
    %19 = vector.broadcast %17 : vector<1x512xf32> to vector<64x512xf32>
    %20 = arith.mulf %16, %19 : vector<64x512xf32>
    %21 = vector.broadcast %18 : vector<1x512xf32> to vector<64x512xf32>
    %22 = arith.addf %20, %21 : vector<64x512xf32>
    %c0_8 = arith.constant 0 : index
    %c0_9 = arith.constant 0 : index
    %23 = vector.load %arg3[%c0_8, %c0_9] : memref<64x512xf32, #tpu.memory_space<vmem>>, vector<64x512xf32>
    tpu.vector_store %arg3[%c0_8, %c0_9], %22 {strides = array<i32>} : memref<64x512xf32, #tpu.memory_space<vmem>>, vector<64x512xf32>,
    return
  }
  func.func @transform_0(%arg0: i32) -> (i32, i32) {
    %c0_i32 = arith.constant 0 : i32
    %c0_i32_0 = arith.constant 0 : i32
    return %arg0, %c0_i32 : i32, i32
  }
  func.func @transform_1(%arg0: i32) -> (i32, i32) {
    %c0_i32 = arith.constant 0 : i32
    %c0_i32_0 = arith.constant 0 : i32
    %c0_i32_1 = arith.constant 0 : i32
    return %c0_i32, %c0_i32_0 : i32, i32
  }
  func.func @transform_2(%arg0: i32) -> (i32, i32) {
    %c0_i32 = arith.constant 0 : i32
    %c0_i32_0 = arith.constant 0 : i32
    return %arg0, %c0_i32 : i32, i32
  }
}

</mosaic_0001>

<llo_original>
// kernel: tpu_custom_call.1
$region0: #{tpu_custom_call.1}
  #allocation0 [shape = 'u32[]', space=smem, size = 0x4, offset = 0x4, fixed_abs, tag = 'smem constant byte address 0x4 - core index']
  #allocation1 [shape = 'u32[72,128]{1,0:T(1,128)}', space=vmem, size = 0x9000, scoped, tag = 'internal scratch']
  %s0 = inlined_call_operand.hbm [shape: f32[512,512], index: 0, kind: input, shape index: {}]
  %s1 = inlined_call_operand.hbm [shape: f32[2,512], index: 1, kind: input, shape index: {}]
  %s2 = inlined_call_operand.hbm [shape: f32[512,512], index: 2, kind: output, shape index: {}]
  %s3 = sld [smem:[#allocation0]]
  $region49: #{tpu_custom_call.1} parent=0
    _
  %s5 = ssub.s32 1, %s3
  %s6 = scalar_select 0, %s5, %s3
  $region1: #{tpu_custom_call.1} parent=0
    #allocation2 [shape = 'u8[262144]{0}', space=vmem, size = 0x40000, scoped, tag = 'input window, operand 0']
    #allocation3 [shape = 's32[2]{0}', space=sflag, size = 0x8, scoped, tag = 'scoped memory for tpu_custom_call.1']
    #allocation4 [shape = 's32[2]{0}', space=sflag, size = 0x8, scoped, tag = 'scoped memory for tpu_custom_call.1']
    #allocation5 [shape = 'u8[4096]{0}', space=vmem, size = 0x1000, scoped, tag = 'input window, operand 1, single buffered']
    #allocation6 [shape = 's32[1]{0}', space=sflag, size = 0x4, scoped, tag = 'scoped memory for tpu_custom_call.1']
    #allocation7 [shape = 'u8[262144]{0}', space=vmem, size = 0x40000, scoped, tag = 'output window, operand 0']
    %7 = vsyncpa [#allocation3], 0
    %s8 = scalar_lea.sflag [#allocation3], 1
    %9 = vsyncpa %s8, 0
    %10 = vsyncpa [#allocation6], 0
    %11 = vsyncpa [#allocation4], 0
    %s12 = scalar_lea.sflag [#allocation4], 1
    %13 = vsyncpa %s12, 0
    loop: start=0, step=1, limit=10
    $region2: #{tpu_custom_call.1} parent=1 // loop_pre_header
      _
    $region3: #{tpu_custom_call.1} parent=1 // loop_header
      %s15 = sphi 0, %s19
      %p16 = scmp.ge.s32.totalorder %s15, 10
      %s25 = sphi 0, %s27
      %s28 = sphi 0, %s25
      %s29 = sphi 0, %s28
      %s45 = sphi 0, %s29
      %s49 = sphi 0, %s49
      %s51 = sphi 0, %s49
      %s52 = sphi 0, %s51
      %s66 = sphi 0, %s52
      %s72 = sphi 0, %s74
      %s75 = sphi 0, %s72
      %s76 = sphi 0, %s75
      %s92 = sphi 0, %s76
    $region4: #{tpu_custom_call.1} parent=1 // loop_header_branch
      %18 = sbr.rel (%p16) target = $region8
    $region5: #{tpu_custom_call.1} parent=1 // loop_body
      %s20 = ssub.s32 %s15, 1
      %s21 = ssub.s32 %s15, 2
      %s22 = sadd.s32 %s15, 1
      %s23 = ssub.s32 %s15, %s22
      %p24 = scmp.eq.s32.totalorder %s23, 0
      %s26 = sadd.s32 %s25, 1
      %s27 = scalar_select %p24, %s25, %s26
      %p30 = pneg %p24
      %p31 = scmp.eq.s32.totalorder %s15, 7
      %p32 = por %p30, %p31
      %p33 = scmp.ne.s32.totalorder %s25, %s28
      %p34 = scmp.eq.s32.totalorder %s15, 0
      %p35 = por %p33, %p34
      %p36 = scmp.ne.s32.totalorder %s25, %s28
      %p37 = scmp.eq.s32.totalorder %s20, 7
      %p38 = por %p36, %p37
      %p39 = scmp.ne.s32.totalorder %s28, %s29
      %p40 = scmp.eq.s32.totalorder %s20, 0
      %p41 = por %p39, %p40
      %p42 = scmp.ne.s32.totalorder %s28, %s29
      %p43 = scmp.eq.s32.totalorder %s21, 7
      %p44 = por %p42, %p43
      %p46 = scmp.ne.s32.totalorder %s29, %s45
      %p47 = scmp.eq.s32.totalorder %s21, 0
      %p48 = por %p46, %p47
      %s50 = sadd.s32 %s49, 1
      %p53 = scmp.eq.s32.totalorder %s15, 7
      %p54 = scmp.ne.s32.totalorder %s49, %s51
      %p55 = scmp.eq.s32.totalorder %s15, 0
      %p56 = por %p54, %p55
      %p57 = scmp.ne.s32.totalorder %s49, %s51
      %p58 = scmp.eq.s32.totalorder %s20, 7
      %p59 = por %p57, %p58
      %p60 = scmp.ne.s32.totalorder %s51, %s52
      %p61 = scmp.eq.s32.totalorder %s20, 0
      %p62 = por %p60, %p61
      %p63 = scmp.ne.s32.totalorder %s51, %s52
      %p64 = scmp.eq.s32.totalorder %s21, 7
      %p65 = por %p63, %p64
      %p67 = scmp.ne.s32.totalorder %s52, %s66
      %p68 = scmp.eq.s32.totalorder %s21, 0
      %p69 = por %p67, %p68
      %s70 = ssub.s32 %s15, %s22
      %p71 = scmp.eq.s32.totalorder %s70, 0
      %s73 = sadd.s32 %s72, 1
      %s74 = scalar_select %p71, %s72, %s73
      %p77 = pneg %p71
      %p78 = scmp.eq.s32.totalorder %s15, 7
      %p79 = por %p77, %p78
      %p80 = scmp.ne.s32.totalorder %s72, %s75
      %p81 = scmp.eq.s32.totalorder %s15, 0
      %p82 = por %p80, %p81
      %p83 = scmp.ne.s32.totalorder %s72, %s75
      %p84 = scmp.eq.s32.totalorder %s20, 7
      %p85 = por %p83, %p84
      %p86 = scmp.ne.s32.totalorder %s75, %s76
      %p87 = scmp.eq.s32.totalorder %s20, 0
      %p88 = por %p86, %p87
      %p89 = scmp.ne.s32.totalorder %s75, %s76
      %p90 = scmp.eq.s32.totalorder %s21, 7
      %p91 = por %p89, %p90
      %p93 = scmp.ne.s32.totalorder %s76, %s92
      %p94 = scmp.eq.s32.totalorder %s21, 0
      %p95 = por %p93, %p94
      %p96 = scmp.le.s32.totalorder 1, %s15
      %p97 = scmp.lt.s32.totalorder %s15, 9
      %p98 = pnand %p96, %p97
      %p99 = pneg %p98
      // Predicated region
      $region9: #{tpu_custom_call.1} parent=5 // pred_check
        _
      $region10: #{tpu_custom_call.1} parent=5 // pred_check_branch
        %101 = sbr.rel (%p98) target = $region12
      $region11: #{tpu_custom_call.1} parent=5 // pred_region
        %s102 = ssub.s32 %s15, 1
        // Predicated region
        $region13: #{tpu_custom_call.1} parent=11 // pred_check
          %p103 = pneg %p62
        $region14: #{tpu_custom_call.1} parent=11 // pred_check_branch
          %105 = sbr.rel (%p103) target = $region16
        $region15: #{tpu_custom_call.1} parent=11 // pred_region
          %107 = vsyncadd [#allocation6], 0
          %s109 = sshll.u32 %s1, 4
          %s110 = int_to_ptr.hbm [resolvable:$true] %s109
          %s111 = sshll.u32 [#allocation5], 4
          %s112 = int_to_ptr.vmem [resolvable:$true] %s111
          %114 = dma.hbm_to_vmem [thread:$0]  %s110, 128, %s112, [#allocation6]
        $region16: #{tpu_custom_call.1} parent=11 // pred_fallthru
          _
      $region12: #{tpu_custom_call.1} parent=5 // pred_fallthru
        _
      %p115 = scmp.lt.s32.totalorder %s15, 8
      // Predicated region
      $region17: #{tpu_custom_call.1} parent=5 // pred_check
        %p116 = pneg %p115
      $region18: #{tpu_custom_call.1} parent=5 // pred_check_branch
        %118 = sbr.rel (%p116) target = $region20
      $region19: #{tpu_custom_call.1} parent=5 // pred_region
        // Predicated region
        $region21: #{tpu_custom_call.1} parent=19 // pred_check
          %p119 = pneg %p35
        $region22: #{tpu_custom_call.1} parent=19 // pred_check_branch
          %121 = sbr.rel (%p119) target = $region24
        $region23: #{tpu_custom_call.1} parent=19 // pred_region
          %s122 = sand.u32 %s25, 1
          %s123 = scalar_lea.sflag [#allocation3], %s122
          %s124 = sand.u32 %s25, 1
          %s125 = smul.addr %s124, 256
          %s126 = scalar_lea.vmem [#allocation2], %s125
          %s127 = smul.u32 8, %s15
          %129 = vsyncadd %s123, 0
          %s130 = smul.addr %s127, 4
          %s131 = smul.addr %s130, 8
          %s132 = scalar_lea.hbm %s0, %s131
          %s133 = sshll.u32 %s132, 4
          %s134 = int_to_ptr.hbm [resolvable:$true] %s133
          %s135 = sshll.u32 %s126, 4
          %s136 = int_to_ptr.vmem [resolvable:$true] %s135
          %141 = dma.hbm_to_vmem [thread:$0]  %s134, 4096, %s136, %s123, 512, 512, 32
        $region24: #{tpu_custom_call.1} parent=19 // pred_fallthru
          _
      $region20: #{tpu_custom_call.1} parent=5 // pred_fallthru
        _
      %p142 = scmp.le.s32.totalorder 1, %s15
      %p143 = scmp.lt.s32.totalorder %s15, 9
      %p144 = pnand %p142, %p143
      %p145 = pneg %p144
      // Predicated region
      $region25: #{tpu_custom_call.1} parent=5 // pred_check
        _
      $region26: #{tpu_custom_call.1} parent=5 // pred_check_branch
        %147 = sbr.rel (%p144) target = $region28
      $region27: #{tpu_custom_call.1} parent=5 // pred_region
        %s148 = ssub.s32 %s15, 1
        %s149 = sand.u32 %s28, 1
        %s150 = scalar_lea.sflag [#allocation3], %s149
        %s151 = sand.u32 %s28, 1
        %s152 = smul.addr %s151, 256
        %s153 = scalar_lea.vmem [#allocation2], %s152
        // Predicated region
        $region29: #{tpu_custom_call.1} parent=27 // pred_check
          %p154 = pneg %p41
        $region30: #{tpu_custom_call.1} parent=27 // pred_check_branch
          %156 = sbr.rel (%p154) target = $region32
        $region31: #{tpu_custom_call.1} parent=27 // pred_region
          %158 = dma.done %s150, 4096
        $region32: #{tpu_custom_call.1} parent=27 // pred_fallthru
          _
        // Predicated region
        $region33: #{tpu_custom_call.1} parent=27 // pred_check
          %p159 = pneg %p62
        $region34: #{tpu_custom_call.1} parent=27 // pred_check_branch
          %161 = sbr.rel (%p159) target = $region36
        $region35: #{tpu_custom_call.1} parent=27 // pred_region
          %163 = dma.done [#allocation6], 128
        $region36: #{tpu_custom_call.1} parent=27 // pred_fallthru
          _
        %s164 = sand.u32 %s28, 1
        %s165 = scalar_lea.sflag [#allocation3], %s164
        %s166 = sand.u32 %s28, 1
        %s167 = smul.addr %s166, 256
        %s168 = scalar_lea.vmem [#allocation2], %s167
        %p169 = pneg %p41
        %p170 = pneg %p38
        %p171 = pneg %p62
        %p172 = pneg %p59
        %p173 = pneg %p88
        %p174 = pneg %p85
        %s175 = sand.u32 %s75, 1
        %s176 = scalar_lea.sflag [#allocation4], %s175
        %s177 = sand.u32 %s75, 1
        %s178 = smul.addr %s177, 256
        %s179 = scalar_lea.vmem [#allocation7], %s178
        %s180 = smul.u32 8, %s20
        %s181 = smul.u32 8, %s20
        %v182 = vld [vmem:[%s153] sm:$0xff]
        %v183 = vld [vmem:[%s153 + $0x8] sm:$0xff]
        %v184 = vld [vmem:[%s153 + $0x10] sm:$0xff]
        %v185 = vld [vmem:[%s153 + $0x18] sm:$0xff]
        %v186 = vld [vmem:[%s153 + $0x20] sm:$0xff]
        %v187 = vld [vmem:[%s153 + $0x28] sm:$0xff]
        %v188 = vld [vmem:[%s153 + $0x30] sm:$0xff]
        %v189 = vld [vmem:[%s153 + $0x38] sm:$0xff]
        %v190 = vld [vmem:[%s153 + $0x40] sm:$0xff]
        %v191 = vld [vmem:[%s153 + $0x48] sm:$0xff]
        %v192 = vld [vmem:[%s153 + $0x50] sm:$0xff]
        %v193 = vld [vmem:[%s153 + $0x58] sm:$0xff]
        %v194 = vld [vmem:[%s153 + $0x60] sm:$0xff]
        %v195 = vld [vmem:[%s153 + $0x68] sm:$0xff]
        %v196 = vld [vmem:[%s153 + $0x70] sm:$0xff]
        %v197 = vld [vmem:[%s153 + $0x78] sm:$0xff]
        %v198 = vld [vmem:[%s153 + $0x80] sm:$0xff]
        %v199 = vld [vmem:[%s153 + $0x88] sm:$0xff]
        %v200 = vld [vmem:[%s153 + $0x90] sm:$0xff]
        %v201 = vld [vmem:[%s153 + $0x98] sm:$0xff]
        %v202 = vld [vmem:[%s153 + $0xa0] sm:$0xff]
        %v203 = vld [vmem:[%s153 + $0xa8] sm:$0xff]
        %v204 = vld [vmem:[%s153 + $0xb0] sm:$0xff]
        %v205 = vld [vmem:[%s153 + $0xb8] sm:$0xff]
        %v206 = vld [vmem:[%s153 + $0xc0] sm:$0xff]
        %v207 = vld [vmem:[%s153 + $0xc8] sm:$0xff]
        %v208 = vld [vmem:[%s153 + $0xd0] sm:$0xff]
        %v209 = vld [vmem:[%s153 + $0xd8] sm:$0xff]
        %v210 = vld [vmem:[%s153 + $0xe0] sm:$0xff]
        %v211 = vld [vmem:[%s153 + $0xe8] sm:$0xff]
        %v212 = vld [vmem:[%s153 + $0xf0] sm:$0xff]
        %v213 = vld [vmem:[%s153 + $0xf8] sm:$0xff]
        %v214 = vadd.f32 %v182, %v183
        %v215 = vadd.f32 %v214, %v184
        %v216 = vadd.f32 %v215, %v185
        %217 = vadd.xlane.f32.xlu0 %v216
        %v218 = vpop.xlane.xlu0 %217
        %v219 = vadd.f32 %v186, %v187
        %v220 = vadd.f32 %v219, %v188
        %v221 = vadd.f32 %v220, %v189
        %222 = vadd.xlane.f32.xlu0 %v221
        %v223 = vpop.xlane.xlu0 %222
        %v224 = vadd.f32 %v190, %v191
        %v225 = vadd.f32 %v224, %v192
        %v226 = vadd.f32 %v225, %v193
        %227 = vadd.xlane.f32.xlu0 %v226
        %v228 = vpop.xlane.xlu0 %227
        %v229 = vadd.f32 %v194, %v195
        %v230 = vadd.f32 %v229, %v196
        %v231 = vadd.f32 %v230, %v197
        %232 = vadd.xlane.f32.xlu0 %v231
        %v233 = vpop.xlane.xlu0 %232
        %v234 = vadd.f32 %v198, %v199
        %v235 = vadd.f32 %v234, %v200
        %v236 = vadd.f32 %v235, %v201
        %237 = vadd.xlane.f32.xlu0 %v236
        %v238 = vpop.xlane.xlu0 %237
        %v239 = vadd.f32 %v202, %v203
        %v240 = vadd.f32 %v239, %v204
        %v241 = vadd.f32 %v240, %v205
        %242 = vadd.xlane.f32.xlu0 %v241
        %v243 = vpop.xlane.xlu0 %242
        %v244 = vadd.f32 %v206, %v207
        %v245 = vadd.f32 %v244, %v208
        %v246 = vadd.f32 %v245, %v209
        %247 = vadd.xlane.f32.xlu0 %v246
        %v248 = vpop.xlane.xlu0 %247
        %v249 = vadd.f32 %v210, %v211
        %v250 = vadd.f32 %v249, %v212
        %v251 = vadd.f32 %v250, %v213
        %252 = vadd.xlane.f32.xlu0 %v251
        %v253 = vpop.xlane.xlu0 %252
        %v254 = vrcp.pop 512.0
        %v255 = vmul.f32 512.0, %v254
        %v256 = vsub.f32 1.0, %v255
        %v257 = vmul.f32 %v254, %v256
        %v258 = vadd.f32 %v254, %v257
        %vm259 = vweird.f32 %v254
        %v260 = vsel %vm259, %v254, %v258
        %v261 = vmul.f32 %v218, %v260
        %v262 = vmul.f32 %v223, %v260
        %v263 = vmul.f32 %v228, %v260
        %v264 = vmul.f32 %v233, %v260
        %v265 = vmul.f32 %v238, %v260
        %v266 = vmul.f32 %v243, %v260
        %v267 = vmul.f32 %v248, %v260
        %v268 = vmul.f32 %v253, %v260
        %v269 = vsub.f32 %v182, %v261
        %v270 = vsub.f32 %v183, %v261
        %v271 = vsub.f32 %v184, %v261
        %v272 = vsub.f32 %v185, %v261
        %v273 = vsub.f32 %v186, %v262
        %v274 = vsub.f32 %v187, %v262
        %v275 = vsub.f32 %v188, %v262
        %v276 = vsub.f32 %v189, %v262
        %v277 = vsub.f32 %v190, %v263
        %v278 = vsub.f32 %v191, %v263
        %v279 = vsub.f32 %v192, %v263
        %v280 = vsub.f32 %v193, %v263
        %v281 = vsub.f32 %v194, %v264
        %v282 = vsub.f32 %v195, %v264
        %v283 = vsub.f32 %v196, %v264
        %v284 = vsub.f32 %v197, %v264
        %v285 = vsub.f32 %v198, %v265
        %v286 = vsub.f32 %v199, %v265
        %v287 = vsub.f32 %v200, %v265
        %v288 = vsub.f32 %v201, %v265
        %v289 = vsub.f32 %v202, %v266
        %v290 = vsub.f32 %v203, %v266
        %v291 = vsub.f32 %v204, %v266
        %v292 = vsub.f32 %v205, %v266
        %v293 = vsub.f32 %v206, %v267
        %v294 = vsub.f32 %v207, %v267
        %v295 = vsub.f32 %v208, %v267
        %v296 = vsub.f32 %v209, %v267
        %v297 = vsub.f32 %v210, %v268
        %v298 = vsub.f32 %v211, %v268
        %v299 = vsub.f32 %v212, %v268
        %v300 = vsub.f32 %v213, %v268
        %v301 = vmul.f32 %v269, %v269
        %v302 = vmul.f32 %v270, %v270
        %v303 = vmul.f32 %v271, %v271
        %v304 = vmul.f32 %v272, %v272
        %v305 = vmul.f32 %v273, %v273
        %v306 = vmul.f32 %v274, %v274
        %v307 = vmul.f32 %v275, %v275
        %v308 = vmul.f32 %v276, %v276
        %v309 = vmul.f32 %v277, %v277
        %v310 = vmul.f32 %v278, %v278
        %v311 = vmul.f32 %v279, %v279
        %v312 = vmul.f32 %v280, %v280
        %v313 = vmul.f32 %v281, %v281
        %v314 = vmul.f32 %v282, %v282
        %v315 = vmul.f32 %v283, %v283
        %v316 = vmul.f32 %v284, %v284
        %v317 = vmul.f32 %v285, %v285
        %v318 = vmul.f32 %v286, %v286
        %v319 = vmul.f32 %v287, %v287
        %v320 = vmul.f32 %v288, %v288
        %v321 = vmul.f32 %v289, %v289
        %v322 = vmul.f32 %v290, %v290
        %v323 = vmul.f32 %v291, %v291
        %v324 = vmul.f32 %v292, %v292
        %v325 = vmul.f32 %v293, %v293
        %v326 = vmul.f32 %v294, %v294
        %v327 = vmul.f32 %v295, %v295
        %v328 = vmul.f32 %v296, %v296
        %v329 = vmul.f32 %v297, %v297
        %v330 = vmul.f32 %v298, %v298
        %v331 = vmul.f32 %v299, %v299
        %v332 = vmul.f32 %v300, %v300
        %v333 = vadd.f32 %v301, %v302
        %v334 = vadd.f32 %v333, %v303
        %v335 = vadd.f32 %v334, %v304
        %336 = vadd.xlane.f32.xlu0 %v335
        %v337 = vpop.xlane.xlu0 %336
        %v338 = vadd.f32 %v305, %v306
        %v339 = vadd.f32 %v338, %v307
        %v340 = vadd.f32 %v339, %v308
        %341 = vadd.xlane.f32.xlu0 %v340
        %v342 = vpop.xlane.xlu0 %341
        %v343 = vadd.f32 %v309, %v310
        %v344 = vadd.f32 %v343, %v311
        %v345 = vadd.f32 %v344, %v312
        %346 = vadd.xlane.f32.xlu0 %v345
        %v347 = vpop.xlane.xlu0 %346
        %v348 = vadd.f32 %v313, %v314
        %v349 = vadd.f32 %v348, %v315
        %v350 = vadd.f32 %v349, %v316
        %351 = vadd.xlane.f32.xlu0 %v350
        %v352 = vpop.xlane.xlu0 %351
        %v353 = vadd.f32 %v317, %v318
        %v354 = vadd.f32 %v353, %v319
        %v355 = vadd.f32 %v354, %v320
        %356 = vadd.xlane.f32.xlu0 %v355
        %v357 = vpop.xlane.xlu0 %356
        %v358 = vadd.f32 %v321, %v322
        %v359 = vadd.f32 %v358, %v323
        %v360 = vadd.f32 %v359, %v324
        %361 = vadd.xlane.f32.xlu0 %v360
        %v362 = vpop.xlane.xlu0 %361
        %v363 = vadd.f32 %v325, %v326
        %v364 = vadd.f32 %v363, %v327
        %v365 = vadd.f32 %v364, %v328
        %366 = vadd.xlane.f32.xlu0 %v365
        %v367 = vpop.xlane.xlu0 %366
        %v368 = vadd.f32 %v329, %v330
        %v369 = vadd.f32 %v368, %v331
        %v370 = vadd.f32 %v369, %v332
        %371 = vadd.xlane.f32.xlu0 %v370
        %v372 = vpop.xlane.xlu0 %371
        %v373 = vmul.f32 %v337, %v260
        %v374 = vmul.f32 %v342, %v260
        %v375 = vmul.f32 %v347, %v260
        %v376 = vmul.f32 %v352, %v260
        %v377 = vmul.f32 %v357, %v260
        %v378 = vmul.f32 %v362, %v260
        %v379 = vmul.f32 %v367, %v260
        %v380 = vmul.f32 %v372, %v260
        %v381 = vadd.f32 %v373, 1e-05
        %v382 = vadd.f32 %v374, 1e-05
        %v383 = vadd.f32 %v375, 1e-05
        %v384 = vadd.f32 %v376, 1e-05
        %v385 = vadd.f32 %v377, 1e-05
        %v386 = vadd.f32 %v378, 1e-05
        %v387 = vadd.f32 %v379, 1e-05
        %v388 = vadd.f32 %v380, 1e-05
        %v389 = vrsqrt.pop %v381
        %v390 = vmul.f32 %v389, %v381
        %v391 = vmul.f32 %v390, %v389
        %v392 = vmul.f32 0.5, %v391
        %v393 = vsub.f32 1.5, %v392
        %v394 = vmul.f32 %v389, %v393
        %vm395 = vweird.f32 %v381
        %vm396 = vweird.f32 %v389
        %vm397 = vmor %vm395, %vm396
        %v398 = vsel %vm397, %v389, %v394
        %v399 = vrsqrt.pop %v382
        %v400 = vmul.f32 %v399, %v382
        %v401 = vmul.f32 %v400, %v399
        %v402 = vmul.f32 0.5, %v401
        %v403 = vsub.f32 1.5, %v402
        %v404 = vmul.f32 %v399, %v403
        %vm405 = vweird.f32 %v382
        %vm406 = vweird.f32 %v399
        %vm407 = vmor %vm405, %vm406
        %v408 = vsel %vm407, %v399, %v404
        %v409 = vrsqrt.pop %v383
        %v410 = vmul.f32 %v409, %v383
        %v411 = vmul.f32 %v410, %v409
        %v412 = vmul.f32 0.5, %v411
        %v413 = vsub.f32 1.5, %v412
        %v414 = vmul.f32 %v409, %v413
        %vm415 = vweird.f32 %v383
        %vm416 = vweird.f32 %v409
        %vm417 = vmor %vm415, %vm416
        %v418 = vsel %vm417, %v409, %v414
        %v419 = vrsqrt.pop %v384
        %v420 = vmul.f32 %v419, %v384
        %v421 = vmul.f32 %v420, %v419
        %v422 = vmul.f32 0.5, %v421
        %v423 = vsub.f32 1.5, %v422
        %v424 = vmul.f32 %v419, %v423
        %vm425 = vweird.f32 %v384
        %vm426 = vweird.f32 %v419
        %vm427 = vmor %vm425, %vm426
        %v428 = vsel %vm427, %v419, %v424
        %v429 = vrsqrt.pop %v385
        %v430 = vmul.f32 %v429, %v385
        %v431 = vmul.f32 %v430, %v429
        %v432 = vmul.f32 0.5, %v431
        %v433 = vsub.f32 1.5, %v432
        %v434 = vmul.f32 %v429, %v433
        %vm435 = vweird.f32 %v385
        %vm436 = vweird.f32 %v429
        %vm437 = vmor %vm435, %vm436
        %v438 = vsel %vm437, %v429, %v434
        %v439 = vrsqrt.pop %v386
        %v440 = vmul.f32 %v439, %v386
        %v441 = vmul.f32 %v440, %v439
        %v442 = vmul.f32 0.5, %v441
        %v443 = vsub.f32 1.5, %v442
        %v444 = vmul.f32 %v439, %v443
        %vm445 = vweird.f32 %v386
        %vm446 = vweird.f32 %v439
        %vm447 = vmor %vm445, %vm446
        %v448 = vsel %vm447, %v439, %v444
        %v449 = vrsqrt.pop %v387
        %v450 = vmul.f32 %v449, %v387
        %v451 = vmul.f32 %v450, %v449
        %v452 = vmul.f32 0.5, %v451
        %v453 = vsub.f32 1.5, %v452
        %v454 = vmul.f32 %v449, %v453
        %vm455 = vweird.f32 %v387
        %vm456 = vweird.f32 %v449
        %vm457 = vmor %vm455, %vm456
        %v458 = vsel %vm457, %v449, %v454
        %v459 = vrsqrt.pop %v388
        %v460 = vmul.f32 %v459, %v388
        %v461 = vmul.f32 %v460, %v459
        %v462 = vmul.f32 0.5, %v461
        %v463 = vsub.f32 1.5, %v462
        %v464 = vmul.f32 %v459, %v463
        %vm465 = vweird.f32 %v388
        %vm466 = vweird.f32 %v459
        %vm467 = vmor %vm465, %vm466
        %v468 = vsel %vm467, %v459, %v464
        %v469 = vmul.f32 %v269, %v398
        %v470 = vmul.f32 %v270, %v398
        %v471 = vmul.f32 %v271, %v398
        %v472 = vmul.f32 %v272, %v398
        %v473 = vmul.f32 %v273, %v408
        %v474 = vmul.f32 %v274, %v408
        %v475 = vmul.f32 %v275, %v408
        %v476 = vmul.f32 %v276, %v408
        %v477 = vmul.f32 %v277, %v418
        %v478 = vmul.f32 %v278, %v418
        %v479 = vmul.f32 %v279, %v418
        %v480 = vmul.f32 %v280, %v418
        %v481 = vmul.f32 %v281, %v428
        %v482 = vmul.f32 %v282, %v428
        %v483 = vmul.f32 %v283, %v428
        %v484 = vmul.f32 %v284, %v428
        %v485 = vmul.f32 %v285, %v438
        %v486 = vmul.f32 %v286, %v438
        %v487 = vmul.f32 %v287, %v438
        %v488 = vmul.f32 %v288, %v438
        %v489 = vmul.f32 %v289, %v448
        %v490 = vmul.f32 %v290, %v448
        %v491 = vmul.f32 %v291, %v448
        %v492 = vmul.f32 %v292, %v448
        %v493 = vmul.f32 %v293, %v458
        %v494 = vmul.f32 %v294, %v458
        %v495 = vmul.f32 %v295, %v458
        %v496 = vmul.f32 %v296, %v458
        %v497 = vmul.f32 %v297, %v468
        %v498 = vmul.f32 %v298, %v468
        %v499 = vmul.f32 %v299, %v468
        %v500 = vmul.f32 %v300, %v468
        %v501 = vld [vmem:[#allocation5] ss:$2 sm:$0xf]
        %s502 = scalar_lea.vmem [#allocation5], 1
        %v503 = vld [vmem:[%s502] ss:$2 sm:$0xf]
        %v505 = vperm.slane %v501, 0
        %v506 = vperm.slane %v501, 1
        %v507 = vperm.slane %v501, 2
        %v508 = vperm.slane %v501, 3
        %v513 = vmul.f32 %v469, %v505
        %v514 = vmul.f32 %v470, %v506
        %v515 = vmul.f32 %v471, %v507
        %v516 = vmul.f32 %v472, %v508
        %v517 = vmul.f32 %v473, %v505
        %v518 = vmul.f32 %v474, %v506
        %v519 = vmul.f32 %v475, %v507
        %v520 = vmul.f32 %v476, %v508
        %v521 = vmul.f32 %v477, %v505
        %v522 = vmul.f32 %v478, %v506
        %v523 = vmul.f32 %v479, %v507
        %v524 = vmul.f32 %v480, %v508
        %v525 = vmul.f32 %v481, %v505
        %v526 = vmul.f32 %v482, %v506
        %v527 = vmul.f32 %v483, %v507
        %v528 = vmul.f32 %v484, %v508
        %v529 = vmul.f32 %v485, %v505
        %v530 = vmul.f32 %v486, %v506
        %v531 = vmul.f32 %v487, %v507
        %v532 = vmul.f32 %v488, %v508
        %v533 = vmul.f32 %v489, %v505
        %v534 = vmul.f32 %v490, %v506
        %v535 = vmul.f32 %v491, %v507
        %v536 = vmul.f32 %v492, %v508
        %v537 = vmul.f32 %v493, %v505
        %v538 = vmul.f32 %v494, %v506
        %v539 = vmul.f32 %v495, %v507
        %v540 = vmul.f32 %v496, %v508
        %v541 = vmul.f32 %v497, %v505
        %v542 = vmul.f32 %v498, %v506
        %v543 = vmul.f32 %v499, %v507
        %v544 = vmul.f32 %v500, %v508
        %v546 = vperm.slane %v503, 0
        %v547 = vperm.slane %v503, 1
        %v548 = vperm.slane %v503, 2
        %v549 = vperm.slane %v503, 3
        %v554 = vadd.f32 %v513, %v546
        %v555 = vadd.f32 %v514, %v547
        %v556 = vadd.f32 %v515, %v548
        %v557 = vadd.f32 %v516, %v549
        %v558 = vadd.f32 %v517, %v546
        %v559 = vadd.f32 %v518, %v547
        %v560 = vadd.f32 %v519, %v548
        %v561 = vadd.f32 %v520, %v549
        %v562 = vadd.f32 %v521, %v546
        %v563 = vadd.f32 %v522, %v547
        %v564 = vadd.f32 %v523, %v548
        %v565 = vadd.f32 %v524, %v549
        %v566 = vadd.f32 %v525, %v546
        %v567 = vadd.f32 %v526, %v547
        %v568 = vadd.f32 %v527, %v548
        %v569 = vadd.f32 %v528, %v549
        %v570 = vadd.f32 %v529, %v546
        %v571 = vadd.f32 %v530, %v547
        %v572 = vadd.f32 %v531, %v548
        %v573 = vadd.f32 %v532, %v549
        %v574 = vadd.f32 %v533, %v546
        %v575 = vadd.f32 %v534, %v547
        %v576 = vadd.f32 %v535, %v548
        %v577 = vadd.f32 %v536, %v549
        %v578 = vadd.f32 %v537, %v546
        %v579 = vadd.f32 %v538, %v547
        %v580 = vadd.f32 %v539, %v548
        %v581 = vadd.f32 %v540, %v549
        %v582 = vadd.f32 %v541, %v546
        %v583 = vadd.f32 %v542, %v547
        %v584 = vadd.f32 %v543, %v548
        %v585 = vadd.f32 %v544, %v549
        %586 = vst [vmem:[%s179] sm:$0xff] %v554
        %587 = vst [vmem:[%s179 + $0x8] sm:$0xff] %v555
        %588 = vst [vmem:[%s179 + $0x10] sm:$0xff] %v556
        %589 = vst [vmem:[%s179 + $0x18] sm:$0xff] %v557
        %590 = vst [vmem:[%s179 + $0x20] sm:$0xff] %v558
        %591 = vst [vmem:[%s179 + $0x28] sm:$0xff] %v559
        %592 = vst [vmem:[%s179 + $0x30] sm:$0xff] %v560
        %593 = vst [vmem:[%s179 + $0x38] sm:$0xff] %v561
        %594 = vst [vmem:[%s179 + $0x40] sm:$0xff] %v562
        %595 = vst [vmem:[%s179 + $0x48] sm:$0xff] %v563
        %596 = vst [vmem:[%s179 + $0x50] sm:$0xff] %v564
        %597 = vst [vmem:[%s179 + $0x58] sm:$0xff] %v565
        %598 = vst [vmem:[%s179 + $0x60] sm:$0xff] %v566
        %599 = vst [vmem:[%s179 + $0x68] sm:$0xff] %v567
        %600 = vst [vmem:[%s179 + $0x70] sm:$0xff] %v568
        %601 = vst [vmem:[%s179 + $0x78] sm:$0xff] %v569
        %602 = vst [vmem:[%s179 + $0x80] sm:$0xff] %v570
        %603 = vst [vmem:[%s179 + $0x88] sm:$0xff] %v571
        %604 = vst [vmem:[%s179 + $0x90] sm:$0xff] %v572
        %605 = vst [vmem:[%s179 + $0x98] sm:$0xff] %v573
        %606 = vst [vmem:[%s179 + $0xa0] sm:$0xff] %v574
        %607 = vst [vmem:[%s179 + $0xa8] sm:$0xff] %v575
        %608 = vst [vmem:[%s179 + $0xb0] sm:$0xff] %v576
        %609 = vst [vmem:[%s179 + $0xb8] sm:$0xff] %v577
        %610 = vst [vmem:[%s179 + $0xc0] sm:$0xff] %v578
        %611 = vst [vmem:[%s179 + $0xc8] sm:$0xff] %v579
        %612 = vst [vmem:[%s179 + $0xd0] sm:$0xff] %v580
        %613 = vst [vmem:[%s179 + $0xd8] sm:$0xff] %v581
        %614 = vst [vmem:[%s179 + $0xe0] sm:$0xff] %v582
        %615 = vst [vmem:[%s179 + $0xe8] sm:$0xff] %v583
        %616 = vst [vmem:[%s179 + $0xf0] sm:$0xff] %v584
        %617 = vst [vmem:[%s179 + $0xf8] sm:$0xff] %v585
        %s618 = sand.u32 %s75, 1
        %s619 = scalar_lea.sflag [#allocation4], %s618
        %s620 = sand.u32 %s75, 1
        %s621 = smul.addr %s620, 256
        %s622 = scalar_lea.vmem [#allocation7], %s621
        // Predicated region
        $region37: #{tpu_custom_call.1} parent=27 // pred_check
          %p623 = pneg %p85
        $region38: #{tpu_custom_call.1} parent=27 // pred_check_branch
          %625 = sbr.rel (%p623) target = $region40
        $region39: #{tpu_custom_call.1} parent=27 // pred_region
          %s626 = smul.u32 8, %s20
          %628 = vsyncadd %s619, 0
          %s629 = smul.addr %s626, 4
          %s630 = smul.addr %s629, 8
          %s631 = scalar_lea.hbm %s2, %s630
          %s632 = sshll.u32 %s622, 4
          %s633 = int_to_ptr.vmem [resolvable:$true] %s632
          %s634 = sshll.u32 %s631, 4
          %s635 = int_to_ptr.hbm [resolvable:$true] %s634
          %640 = dma.vmem_to_hbm [thread:$0]  %s633, 4096, %s635, %s619, 512, 512, 32
        $region40: #{tpu_custom_call.1} parent=27 // pred_fallthru
          _
      $region28: #{tpu_custom_call.1} parent=5 // pred_fallthru
        _
      %p641 = scmp.le.s32.totalorder 2, %s15
      // Predicated region
      $region41: #{tpu_custom_call.1} parent=5 // pred_check
        %p642 = pneg %p641
      $region42: #{tpu_custom_call.1} parent=5 // pred_check_branch
        %644 = sbr.rel (%p642) target = $region44
      $region43: #{tpu_custom_call.1} parent=5 // pred_region
        %s645 = ssub.s32 %s15, 2
        // Predicated region
        $region45: #{tpu_custom_call.1} parent=43 // pred_check
          %p646 = pneg %p91
        $region46: #{tpu_custom_call.1} parent=43 // pred_check_branch
          %648 = sbr.rel (%p646) target = $region48
        $region47: #{tpu_custom_call.1} parent=43 // pred_region
          %s649 = sand.u32 %s76, 1
          %s650 = scalar_lea.sflag [#allocation4], %s649
          %s651 = sand.u32 %s76, 1
          %s652 = smul.addr %s651, 256
          %s653 = scalar_lea.vmem [#allocation7], %s652
          %655 = dma.done %s650, 4096
        $region48: #{tpu_custom_call.1} parent=43 // pred_fallthru
          _
      $region44: #{tpu_custom_call.1} parent=5 // pred_fallthru
        _
    $region6: #{tpu_custom_call.1} parent=1 // loop_footer
      %s19 = sadd.s32 1, %s15
    $region7: #{tpu_custom_call.1} parent=1 // loop_footer_branch
      %14 = sbr.rel target = $region3
    $region8: #{tpu_custom_call.1} parent=1 // loop_exit
      _
    %656 = vsyncpa [#allocation3], 1
    %s657 = scalar_lea.sflag [#allocation3], 1
    %658 = vsyncpa %s657, 1
    %659 = vsyncpa [#allocation6], 1
    %660 = vsyncpa [#allocation4], 1
    %s661 = scalar_lea.sflag [#allocation4], 1
    %662 = vsyncpa %s661, 1

</llo_original>
